<compile_context>
chip_gen: v7x
topology: tpu7x:2x2x1
jax: 0.10.0
libtpu: 0.0.40
codegen_flags: <defaults>
</compile_context>

<pallas_src>
import functools
from dataclasses import dataclass

import jax
import jax.numpy as jnp
from jax.experimental import pallas as pl
from jax.experimental.pallas import tpu as pltpu


# ----------------------------------------------------------------------------- params
@dataclass(frozen=True)
class Params:
    word_vocab_size: int
    char_vocab_size: int
    word_embed_size: int
    char_embed_size: int
    max_word_len: int
    kernels: tuple            # ((kernel_width, out_channels), ...)
    encoder_rnn_size: int
    encoder_num_layers: int
    latent_variable_size: int
    decoder_rnn_size: int
    decoder_num_layers: int


def _round_up(x, m):
    return ((x + m - 1) // m) * m


def _pick_vocab_tile(vp):
    for tn in (1024, 512, 256, 128):
        if vp % tn == 0:
            return tn
    return vp


# ----------------------------------------------------------------------------- fused dual TDNN kernel
def _dual_tdnn_kernel(x1_ref, w1_ref, b1_ref, x2_ref, w2_ref, b2_ref,
                      o1_ref, o2_ref, *, groups1, groups2):
    """Both embeddings' char-TDNNs in one kernel: matmul + ReLU + max over positions."""
    def one(x_ref, w_ref, b_ref, groups, o_ref):
        y = jnp.dot(x_ref[...], w_ref[...], preferred_element_type=jnp.float32) + b_ref[...]
        y = jnp.maximum(y, 0.0)
        outs = []
        off = 0
        for (P, oc) in groups:
            m = y[:, off:off + oc]
            for p in range(1, P):
                m = jnp.maximum(m, y[:, off + p * oc: off + (p + 1) * oc])
            outs.append(m)
            off += P * oc
        o_ref[...] = jnp.concatenate(outs, axis=1)
    one(x1_ref, w1_ref, b1_ref, groups1, o1_ref)
    one(x2_ref, w2_ref, b2_ref, groups2, o2_ref)


def dual_tdnn_forward(ce1, emb1, ce2, emb2):
    B1, T1, Wl1, Ce1 = ce1.shape
    B2, T2, Wl2, Ce2 = ce2.shape
    x1 = ce1.reshape(B1 * T1, Wl1 * Ce1).astype(jnp.bfloat16)
    x2 = ce2.reshape(B2 * T2, Wl2 * Ce2).astype(jnp.bfloat16)
    n1 = sum(oc for _, oc in emb1["groups"])
    n2 = sum(oc for _, oc in emb2["groups"])
    kernel = functools.partial(_dual_tdnn_kernel,
                               groups1=tuple(emb1["groups"]), groups2=tuple(emb2["groups"]))
    o1, o2 = pl.pallas_call(
        kernel,
        out_shape=(jax.ShapeDtypeStruct((B1 * T1, n1), jnp.float32),
                   jax.ShapeDtypeStruct((B2 * T2, n2), jnp.float32)),
        grid=(1,),
        in_specs=[pl.BlockSpec(x1.shape, lambda i: (0, 0)),
                  pl.BlockSpec(emb1["tdnn_w"].shape, lambda i: (0, 0)),
                  pl.BlockSpec(emb1["tdnn_b"].shape, lambda i: (0, 0)),
                  pl.BlockSpec(x2.shape, lambda i: (0, 0)),
                  pl.BlockSpec(emb2["tdnn_w"].shape, lambda i: (0, 0)),
                  pl.BlockSpec(emb2["tdnn_b"].shape, lambda i: (0, 0))],
        out_specs=[pl.BlockSpec((B1 * T1, n1), lambda i: (0, 0)),
                   pl.BlockSpec((B2 * T2, n2), lambda i: (0, 0))],
    )(x1, emb1["tdnn_w"], emb1["tdnn_b"], x2, emb2["tdnn_w"], emb2["tdnn_b"])
    return o1.reshape(B1, T1, n1), o2.reshape(B2, T2, n2)


# ----------------------------------------------------------------------------- fused bidirectional encoder LSTM
def _bilstm_kernel(x_ref, wih_ref, whh_ref, b_ref, h0_ref, c0_ref,
                   h_out_ref, c_out_ref, *, T, Bp, H):
    """Fused fwd+bwd single-layer LSTM.

    x rows are [x_t | x_{T-1-t}] (2E lanes); the stacked (2E, 8H) wih already routes the
    first half to the forward gate columns and the second half to the backward ones, so
    the prologue matmul produces pre-blended gates and the loop only does the recurrence.
    Gate columns are gate-major interleaved: [i_f,i_b,f_f,f_b,g_f,g_b,o_f,o_b], each H wide.
    """
    H2 = 2 * H
    xg = jnp.dot(x_ref[...], wih_ref[...], preferred_element_type=jnp.float32) + b_ref[...]
    whh = whh_ref[...]                               # bf16, read once
    h = h0_ref[...]                                  # (Bp, 2H) f32 = [fwd | bwd]
    c = c0_ref[...]
    for t in range(T):                               # fully unrolled (T small)
        gates = xg[t * Bp:(t + 1) * Bp, :] + jnp.dot(
            h.astype(whh.dtype), whh, preferred_element_type=jnp.float32)
        i = jax.nn.sigmoid(gates[:, 0:H2])
        f = jax.nn.sigmoid(gates[:, H2:2 * H2])
        g = jnp.tanh(gates[:, 2 * H2:3 * H2])
        o = jax.nn.sigmoid(gates[:, 3 * H2:4 * H2])
        c = f * c + i * g
        h = o * jnp.tanh(c)
    h_out_ref[...] = h
    c_out_ref[...] = c


def bilstm_encoder(x_btf, enc_w, state, Bp):
    """x_btf: [B, T, E] -> (h_cat [Bp, 2H], c_cat [Bp, 2H]) in [fwd | bwd] layout (padded batch)."""
    B, T, E = x_btf.shape
    H = enc_w["H"]
    H2 = 2 * H
    if state is None:
        h0 = jnp.zeros((Bp, H2), jnp.float32)
        c0 = jnp.zeros((Bp, H2), jnp.float32)
    else:
        h0, c0 = state
    x_tm = jnp.transpose(x_btf, (1, 0, 2))                       # (T, B, E) time-major
    if Bp > B:
        x_tm = jnp.pad(x_tm, ((0, 0), (0, Bp - B), (0, 0)))
    x_rev = x_tm[::-1]                                           # time-reversed (for bwd dir)
    x_cat = jnp.concatenate([x_tm, x_rev], axis=-1)              # (T, Bp, 2E)
    x_cat = x_cat.reshape(T * Bp, 2 * E).astype(jnp.bfloat16)
    kernel = functools.partial(_bilstm_kernel, T=T, Bp=Bp, H=H)
    h_cat, c_cat = pl.pallas_call(
        kernel,
        out_shape=(jax.ShapeDtypeStruct((Bp, H2), jnp.float32),
                   jax.ShapeDtypeStruct((Bp, H2), jnp.float32)),
        grid=(1,),
        in_specs=[pl.BlockSpec((T * Bp, 2 * E), lambda i: (0, 0)),
                  pl.BlockSpec(enc_w["wih"].shape, lambda i: (0, 0)),
                  pl.BlockSpec(enc_w["whh"].shape, lambda i: (0, 0)),
                  pl.BlockSpec(enc_w["b"].shape, lambda i: (0, 0)),
                  pl.BlockSpec((Bp, H2), lambda i: (0, 0)),
                  pl.BlockSpec((Bp, H2), lambda i: (0, 0))],
        out_specs=[pl.BlockSpec((Bp, H2), lambda i: (0, 0)),
                   pl.BlockSpec((Bp, H2), lambda i: (0, 0))],
    )(x_cat, enc_w["wih"], enc_w["whh"], enc_w["b"], h0, c0)
    return h_cat, c_cat


# ----------------------------------------------------------------------------- fused 2-layer decoder LSTM
def _decoder_kernel(x_ref, w1ih_ref, w1hh_ref, b1_ref, w2ih_ref, w2hh_ref, b2_ref,
                    h0_ref, c0_ref, rnn_ref, hT_ref, cT_ref, *, T, Bp, H):
    # Prologue: layer-1 input projection for all timesteps in one matmul.
    xg1 = jnp.dot(x_ref[...], w1ih_ref[...], preferred_element_type=jnp.float32) + b1_ref[...]
    w1hh = w1hh_ref[...]
    w2ih = w2ih_ref[...]
    w2hh = w2hh_ref[...]
    b2 = jnp.broadcast_to(b2_ref[...], (Bp, 4 * H))              # hoisted broadcast
    h1 = h0_ref[0]
    c1 = c0_ref[0]
    h2 = h0_ref[1]
    c2 = c0_ref[1]
    for t in range(T):
        # ---- layer 1
        g1 = xg1[t * Bp:(t + 1) * Bp, :] + jnp.dot(
            h1.astype(w1hh.dtype), w1hh, preferred_element_type=jnp.float32)
        i1 = jax.nn.sigmoid(g1[:, 0:H])
        f1 = jax.nn.sigmoid(g1[:, H:2 * H])
        gg1 = jnp.tanh(g1[:, 2 * H:3 * H])
        o1 = jax.nn.sigmoid(g1[:, 3 * H:4 * H])
        c1 = f1 * c1 + i1 * gg1
        h1 = o1 * jnp.tanh(c1)
        # ---- layer 2 (no lane concat: two K=H matmuls)
        g2 = (jnp.dot(h1.astype(w2ih.dtype), w2ih, preferred_element_type=jnp.float32)
              + jnp.dot(h2.astype(w2hh.dtype), w2hh, preferred_element_type=jnp.float32)
              + b2)
        i2 = jax.nn.sigmoid(g2[:, 0:H])
        f2 = jax.nn.sigmoid(g2[:, H:2 * H])
        gg2 = jnp.tanh(g2[:, 2 * H:3 * H])
        o2 = jax.nn.sigmoid(g2[:, 3 * H:4 * H])
        c2 = f2 * c2 + i2 * gg2
        h2 = o2 * jnp.tanh(c2)
        rnn_ref[t * Bp:(t + 1) * Bp, :] = h2                     # tile-aligned direct store
    hT_ref[0] = h1
    hT_ref[1] = h2
    cT_ref[0] = c1
    cT_ref[1] = c2


# ----------------------------------------------------------------------------- tiled vocab head
def _vocab_head_kernel(h_ref, w_ref, b_ref, o_ref):
    o_ref[...] = (jnp.dot(h_ref[...], w_ref[...], preferred_element_type=jnp.float32)
                  + b_ref[...])


def vocab_head(hidden_bm, fcw, fcb):
    """hidden_bm: (M, H) batch-major, fcw: (H, Vp) bf16 with Vp a multiple of 128."""
    M, H = hidden_bm.shape
    Vp = fcw.shape[1]
    TN = _pick_vocab_tile(Vp)
    return pl.pallas_call(
        _vocab_head_kernel,
        out_shape=jax.ShapeDtypeStruct((M, Vp), jnp.float32),
        grid=(Vp // TN,),
        in_specs=[pl.BlockSpec((M, H), lambda j: (0, 0)),
                  pl.BlockSpec((H, TN), lambda j: (0, j)),
                  pl.BlockSpec((1, TN), lambda j: (0, j))],
        out_specs=pl.BlockSpec((M, TN), lambda j: (0, j)),
        compiler_params=pltpu.CompilerParams(dimension_semantics=("parallel",)),
    )(hidden_bm, fcw, fcb)


def decoder_forward(decoder_input_bte, z, drop_prob, initial_state, dec_w, dropout_key, Bp):
    B, T, We = decoder_input_bte.shape
    L = z.shape[-1]
    H = dec_w["H"]
    V = dec_w["V"]
    Vp = dec_w["fcw"].shape[1]
    if drop_prob > 0.0:
        keep = 1.0 - drop_prob
        mask = jax.random.bernoulli(dropout_key, keep, decoder_input_bte.shape)
        decoder_input_bte = jnp.where(mask, decoder_input_bte / keep, 0.0)
    z_rep = jnp.broadcast_to(z[:, None, :], (B, T, L))
    x = jnp.concatenate([decoder_input_bte, z_rep], axis=-1)     # (B, T, Din)
    x = jnp.transpose(x, (1, 0, 2))                              # (T, B, Din) time-major
    if Bp > B:
        x = jnp.pad(x, ((0, 0), (0, Bp - B), (0, 0)))
    x = x.reshape(T * Bp, We + L).astype(jnp.bfloat16)
    h0, c0 = initial_state                                       # (2, Bp, H) each
    kernel = functools.partial(_decoder_kernel, T=T, Bp=Bp, H=H)
    rnn, hT, cT = pl.pallas_call(
        kernel,
        out_shape=(jax.ShapeDtypeStruct((T * Bp, H), jnp.float32),
                   jax.ShapeDtypeStruct((2, Bp, H), jnp.float32),
                   jax.ShapeDtypeStruct((2, Bp, H), jnp.float32)),
        grid=(1,),
        in_specs=[pl.BlockSpec((T * Bp, We + L), lambda i: (0, 0)),
                  pl.BlockSpec(dec_w["w1ih"].shape, lambda i: (0, 0)),
                  pl.BlockSpec(dec_w["w1hh"].shape, lambda i: (0, 0)),
                  pl.BlockSpec(dec_w["b1"].shape, lambda i: (0, 0)),
                  pl.BlockSpec(dec_w["w2ih"].shape, lambda i: (0, 0)),
                  pl.BlockSpec(dec_w["w2hh"].shape, lambda i: (0, 0)),
                  pl.BlockSpec(dec_w["b2"].shape, lambda i: (0, 0)),
                  pl.BlockSpec((2, Bp, H), lambda i: (0, 0, 0)),
                  pl.BlockSpec((2, Bp, H), lambda i: (0, 0, 0))],
        out_specs=[pl.BlockSpec((T * Bp, H), lambda i: (0, 0)),
                   pl.BlockSpec((2, Bp, H), lambda i: (0, 0, 0)),
                   pl.BlockSpec((2, Bp, H), lambda i: (0, 0, 0))],
    )(x, dec_w["w1ih"], dec_w["w1hh"], dec_w["b1"], dec_w["w2ih"], dec_w["w2hh"],
      dec_w["b2"], h0, c0)
    # Re-order the (small) hidden states to batch-major so the (big) logits come out
    # batch-major directly from the vocab head — no logits transpose / HBM round trip.
    hidden_bm = rnn.reshape(T, Bp, H).transpose(1, 0, 2).reshape(Bp * T, H).astype(jnp.bfloat16)
    logits_p = vocab_head(hidden_bm, dec_w["fcw"], dec_w["fcb"])
    logits = logits_p.reshape(Bp, T, Vp)[:B, :, :V]
    return logits, (hT[:, :B, :], cT[:, :B, :])


# ----------------------------------------------------------------------------- fused mu/logvar + reparam + KLD
def _latent_kernel(ctx_ref, w_ref, b_ref, eps_ref, out_ref, kld_ref, *, L, B, LP):
    ml = jnp.dot(ctx_ref[...], w_ref[...], preferred_element_type=jnp.float32) + b_ref[...]
    mu = ml[:, 0:L]
    lv = ml[:, L:2 * L]
    std = jnp.exp(0.5 * lv)
    z = eps_ref[...] * std + mu
    pieces = [mu, std, z]
    if LP > 3 * L:
        pieces.append(jnp.zeros((mu.shape[0], LP - 3 * L), jnp.float32))
    out_ref[...] = jnp.concatenate(pieces, axis=1)               # lane-dense (Bp, LP) store
    per = -0.5 * jnp.sum(lv - mu * mu - jnp.exp(lv) + 1.0, axis=1, keepdims=True)
    kld_ref[...] = jnp.sum(per[0:B, :], axis=0, keepdims=True) / float(B)


def latent_forward(context, w_stack, b_stack, eps, B):
    Bp = context.shape[0]
    L = eps.shape[1]
    LP = max(128, _round_up(3 * L, 128))
    kernel = functools.partial(_latent_kernel, L=L, B=B, LP=LP)
    out, kld = pl.pallas_call(
        kernel,
        out_shape=(jax.ShapeDtypeStruct((Bp, LP), jnp.float32),
                   jax.ShapeDtypeStruct((1, 1), jnp.float32)),
        grid=(1,),
        in_specs=[pl.BlockSpec(context.shape, lambda i: (0, 0)),
                  pl.BlockSpec(w_stack.shape, lambda i: (0, 0)),
                  pl.BlockSpec(b_stack.shape, lambda i: (0, 0)),
                  pl.BlockSpec((Bp, L), lambda i: (0, 0))],
        out_specs=[pl.BlockSpec((Bp, LP), lambda i: (0, 0)),
                   pl.BlockSpec((1, 1), lambda i: (0, 0))],
    )(context, w_stack, b_stack, eps)
    mu = out[:B, 0:L]
    std = out[:B, L:2 * L]
    z = out[:B, 2 * L:3 * L]
    return mu, std, z, kld[0, 0]


# ----------------------------------------------------------------------------- glue modules
def dual_embedding_forward(word1, char1, emb1, word2, char2, emb2):
    # Embedding gathers stay in plain JAX (data-dependent gather; no rectangular-tile win).
    we1 = jnp.take(emb1["word_table"], word1, axis=0)
    we2 = jnp.take(emb2["word_table"], word2, axis=0)
    ce1 = jnp.take(emb1["char_table"], char1, axis=0)
    ce2 = jnp.take(emb2["char_table"], char2, axis=0)
    cf1, cf2 = dual_tdnn_forward(ce1, emb1, ce2, emb2)
    return (jnp.concatenate([we1, cf1], axis=-1),
            jnp.concatenate([we2, cf2], axis=-1))


# ----------------------------------------------------------------------------- full forward
def rvae_forward(weights, p, p2, drop_prob,
                 encoder_word_input, encoder_character_input,
                 encoder_word_input_2, encoder_character_input_2,
                 decoder_word_input_2, rng_key):
    B = encoder_word_input.shape[0]
    Bp = _round_up(max(B, 8), 8)                # pad batch to a full sublane for the MXU
    H = p.encoder_rnn_size
    L = p.latent_variable_size

    enc_in, enc_in_2 = dual_embedding_forward(
        encoder_word_input, encoder_character_input, weights["emb1"],
        encoder_word_input_2, encoder_character_input_2, weights["emb2"])

    h1_cat, c1_cat = bilstm_encoder(enc_in, weights["enc1"], None, Bp)
    h2_cat, _ = bilstm_encoder(enc_in_2, weights["enc2"], (h1_cat, c1_cat), Bp)

    key_z, key_drop = jax.random.split(rng_key)
    eps = jax.random.normal(key_z, (Bp, L), dtype=jnp.float32)
    mu, std, z, kld = latent_forward(h2_cat, weights["ctx_w"], weights["ctx_b"], eps, B)

    # Decoder init state = encoder-1 final (fwd, bwd) states as the 2 decoder layers
    # (same semantics as the previous implementation).
    h0_dec = jnp.stack([h1_cat[:, :H], h1_cat[:, H:]], axis=0)   # (2, Bp, H)
    c0_dec = jnp.stack([c1_cat[:, :H], c1_cat[:, H:]], axis=0)

    decoder_input_2 = jnp.take(weights["emb2"]["word_table"], decoder_word_input_2, axis=0)
    out, final_state = decoder_forward(decoder_input_2, z, drop_prob, (h0_dec, c0_dec),
                                       weights["dec"], key_drop, Bp)
    return out, final_state, kld, mu, std


# ----------------------------------------------------------------------------- weight init + stacking
def _uniform(key, shape, scale):
    return jax.random.uniform(key, shape, jnp.float32, -scale, scale)


def build_lstm(key, in_size, hidden):
    k1, k2, k3, k4 = jax.random.split(key, 4)
    s = 1.0 / float(hidden) ** 0.5
    w_ih = _uniform(k1, (4 * hidden, in_size), s)
    w_hh = _uniform(k2, (4 * hidden, hidden), s)
    b_ih = _uniform(k3, (4 * hidden,), s)
    b_hh = _uniform(k4, (4 * hidden,), s)
    return dict(w_ih_t=w_ih.T, w_hh_t=w_hh.T, b=(b_ih + b_hh).reshape(1, 4 * hidden))


def build_linear(key, in_size, out_size):
    k1, k2 = jax.random.split(key)
    s = 1.0 / float(in_size) ** 0.5
    return _uniform(k1, (in_size, out_size), s), _uniform(k2, (out_size,), s)


def build_embedding(key, p):
    kw_key, kc_key, *kt = jax.random.split(key, 2 + len(p.kernels))
    Wl, Ce = p.max_word_len, p.char_embed_size
    Kin = Wl * Ce
    cols, bcols, groups = [], [], []
    for k, (kwid, oc) in zip(kt, p.kernels):
        w_t, b = build_linear(k, kwid * Ce, oc)
        P = Wl - kwid + 1
        for pos in range(P):
            wp = jnp.zeros((Kin, oc), jnp.float32)
            wp = wp.at[pos * Ce:(pos + kwid) * Ce, :].set(w_t)
            cols.append(wp)
            bcols.append(b)
        groups.append((P, oc))
    return dict(
        word_table=0.1 * jax.random.normal(kw_key, (p.word_vocab_size, p.word_embed_size)),
        char_table=0.1 * jax.random.normal(kc_key, (p.char_vocab_size, p.char_embed_size)),
        tdnn_w=jnp.concatenate(cols, axis=1).astype(jnp.bfloat16),
        tdnn_b=jnp.concatenate(bcols).reshape(1, -1),
        groups=tuple(groups))


def _interleave_gates(mf, mb, H):
    """[..., 4H] x2 -> [..., 8H] gate-major interleave: [i_f,i_b,f_f,f_b,g_f,g_b,o_f,o_b]."""
    parts = []
    for k in range(4):
        parts.append(mf[..., k * H:(k + 1) * H])
        parts.append(mb[..., k * H:(k + 1) * H])
    return jnp.concatenate(parts, axis=-1)


def stack_bilstm(fwd, bwd, H):
    E = fwd["w_ih_t"].shape[0]
    zE = jnp.zeros((E, 4 * H), jnp.float32)
    zH = jnp.zeros((H, 4 * H), jnp.float32)
    # Rows [0:E] consume x_t (forward columns only); rows [E:2E] consume x_{T-1-t}
    # (backward columns only): the prologue matmul produces pre-blended gates directly.
    wih = jnp.concatenate([_interleave_gates(fwd["w_ih_t"], zE, H),
                           _interleave_gates(zE, bwd["w_ih_t"], H)], axis=0)        # (2E, 8H)
    whh = jnp.concatenate([_interleave_gates(fwd["w_hh_t"], zH, H),
                           _interleave_gates(zH, bwd["w_hh_t"], H)], axis=0)        # (2H, 8H)
    b = _interleave_gates(fwd["b"], bwd["b"], H)                                    # (1, 8H)
    return dict(wih=wih.astype(jnp.bfloat16), whh=whh.astype(jnp.bfloat16), b=b, H=H)


def stack_decoder(l1, l2, fc_w, fc_b, H, V):
    Vp = _round_up(V, 128)                       # lane-dense vocab head (padded, sliced outside)
    fcw = jnp.pad(fc_w, ((0, 0), (0, Vp - V)))
    fcb = jnp.pad(fc_b, ((0, Vp - V),)).reshape(1, Vp)
    return dict(w1ih=l1["w_ih_t"].astype(jnp.bfloat16), w1hh=l1["w_hh_t"].astype(jnp.bfloat16),
                b1=l1["b"],
                w2ih=l2["w_ih_t"].astype(jnp.bfloat16), w2hh=l2["w_hh_t"].astype(jnp.bfloat16),
                b2=l2["b"],
                fcw=fcw.astype(jnp.bfloat16), fcb=fcb, H=H, V=V)


def build_weights(key, p, p2):
    ks = jax.random.split(key, 11)
    emb1 = build_embedding(ks[0], p)
    emb2 = build_embedding(ks[1], p2)
    emb_out_1 = p.word_embed_size + sum(oc for _, oc in p.kernels)
    emb_out_2 = p2.word_embed_size + sum(oc for _, oc in p2.kernels)
    dec_in = p2.word_embed_size + p2.latent_variable_size

    enc1 = stack_bilstm(build_lstm(ks[2], emb_out_1, p.encoder_rnn_size),
                        build_lstm(ks[3], emb_out_1, p.encoder_rnn_size),
                        p.encoder_rnn_size)
    enc2 = stack_bilstm(build_lstm(ks[4], emb_out_2, p2.encoder_rnn_size),
                        build_lstm(ks[5], emb_out_2, p2.encoder_rnn_size),
                        p2.encoder_rnn_size)

    mu_w, mu_b = build_linear(ks[8], 2 * p.encoder_rnn_size, p.latent_variable_size)
    lv_w, lv_b = build_linear(ks[9], 2 * p.encoder_rnn_size, p.latent_variable_size)
    ctx_w = jnp.concatenate([mu_w, lv_w], axis=1)                       # (2H, 2L)
    ctx_b = jnp.concatenate([mu_b, lv_b]).reshape(1, -1)

    fc_w, fc_b = build_linear(ks[10], p2.decoder_rnn_size, p2.word_vocab_size)
    dec = stack_decoder(build_lstm(ks[6], dec_in, p2.decoder_rnn_size),
                        build_lstm(ks[7], p2.decoder_rnn_size, p2.decoder_rnn_size),
                        fc_w, fc_b, p2.decoder_rnn_size, p2.word_vocab_size)
    return dict(emb1=emb1, emb2=emb2, enc1=enc1, enc2=enc2,
                ctx_w=ctx_w, ctx_b=ctx_b, dec=dec)


# ----------------------------------------------------------------------------- main
if __name__ == "__main__":
    B, T, WL = 2, 8, 6
    p = Params(word_vocab_size=40, char_vocab_size=30, word_embed_size=16,
               char_embed_size=8, max_word_len=WL, kernels=((1, 4), (2, 6), (3, 6)),
               encoder_rnn_size=32, encoder_num_layers=1, latent_variable_size=16,
               decoder_rnn_size=32, decoder_num_layers=2)
    p2 = Params(word_vocab_size=44, char_vocab_size=30, word_embed_size=16,
                char_embed_size=8, max_word_len=WL, kernels=((1, 4), (2, 6), (3, 6)),
                encoder_rnn_size=32, encoder_num_layers=1, latent_variable_size=16,
                decoder_rnn_size=32, decoder_num_layers=2)

    root = jax.random.PRNGKey(0)
    k_weights, k_inputs, k_noise = jax.random.split(root, 3)
    weights = build_weights(k_weights, p, p2)

    ik = jax.random.split(k_inputs, 5)
    encoder_word_input = jax.random.randint(ik[0], (B, T), 0, p.word_vocab_size)
    encoder_character_input = jax.random.randint(ik[1], (B, T, WL), 0, p.char_vocab_size)
    encoder_word_input_2 = jax.random.randint(ik[2], (B, T), 0, p2.word_vocab_size)
    encoder_character_input_2 = jax.random.randint(ik[3], (B, T, WL), 0, p2.char_vocab_size)
    decoder_word_input_2 = jax.random.randint(ik[4], (B, T + 1), 0, p2.word_vocab_size)

    out, final_state, kld, mu, std = rvae_forward(
        weights, p, p2, 0.0,
        encoder_word_input, encoder_character_input,
        encoder_word_input_2, encoder_character_input_2,
        decoder_word_input_2, k_noise)

    jax.block_until_ready((out, final_state, kld, mu, std))
    assert out.shape == (B, T + 1, p2.word_vocab_size)
    assert final_state[0].shape == (2, B, p2.decoder_rnn_size)
    assert final_state[1].shape == (2, B, p2.decoder_rnn_size)
    assert mu.shape == (B, p.latent_variable_size)
    assert std.shape == (B, p.latent_variable_size)
    print("KERNEL_OK")
</pallas_src>

<mosaic_0001>
module attributes {stable_mosaic.version = 11 : i64} {
  func.func @_dual_tdnn_kernel(%arg0: i32, %arg1: memref<16x48xbf16, #tpu.memory_space<vmem>>, %arg2: memref<48x78xbf16, #tpu.memory_space<vmem>>, %arg3: memref<1x78xf32, #tpu.memory_space<vmem>>, %arg4: memref<16x48xbf16, #tpu.memory_space<vmem>>, %arg5: memref<48x78xbf16, #tpu.memory_space<vmem>>, %arg6: memref<1x78xf32, #tpu.memory_space<vmem>>, %arg7: memref<16x16xf32, #tpu.memory_space<vmem>>, %arg8: memref<16x16xf32, #tpu.memory_space<vmem>>) attributes {dimension_semantics = [#tpu.dimension_semantics<arbitrary>], iteration_bounds = array<i64: 1>, scalar_prefetch = 0 : i64, scratch_operands = 0 : i64, tpu.core_type = #tpu.core_type<tc>, window_params = [{pipeline_mode = #tpu.pipeline_mode<synchronous>, transform_indices = @transform_0, window_bounds = array<i64: 16, 48>}, {pipeline_mode = #tpu.pipeline_mode<synchronous>, transform_indices = @transform_1, window_bounds = array<i64: 48, 78>}, {pipeline_mode = #tpu.pipeline_mode<synchronous>, transform_indices = @transform_2, window_bounds = array<i64: 1, 78>}, {pipeline_mode = #tpu.pipeline_mode<synchronous>, transform_indices = @transform_3, window_bounds = array<i64: 16, 48>}, {pipeline_mode = #tpu.pipeline_mode<synchronous>, transform_indices = @transform_4, window_bounds = array<i64: 48, 78>}, {pipeline_mode = #tpu.pipeline_mode<synchronous>, transform_indices = @transform_5, window_bounds = array<i64: 1, 78>}, {pipeline_mode = #tpu.pipeline_mode<synchronous>, transform_indices = @transform_6, window_bounds = array<i64: 16, 16>}, {pipeline_mode = #tpu.pipeline_mode<synchronous>, transform_indices = @transform_7, window_bounds = array<i64: 16, 16>}]} {
    %c0 = arith.constant 0 : index
    %c0_0 = arith.constant 0 : index
    %0 = vector.load %arg1[%c0, %c0_0] : memref<16x48xbf16, #tpu.memory_space<vmem>>, vector<16x48xbf16>
    %c0_1 = arith.constant 0 : index
    %c0_2 = arith.constant 0 : index
    %1 = vector.load %arg2[%c0_1, %c0_2] : memref<48x78xbf16, #tpu.memory_space<vmem>>, vector<48x78xbf16>
    %cst = arith.constant dense<0.000000e+00> : vector<16x78xf32>
    %2 = tpu.matmul %0, %1, %cst {dimension_numbers = #tpu.dot_dimension_numbers<[1], [0], [0], [1], [0, 0, 1, 1], [], []>} : vector<16x48xbf16>, vector<48x78xbf16>, vector<16x78xf32> -> vector<16x78xf32>
    %c0_3 = arith.constant 0 : index
    %c0_4 = arith.constant 0 : index
    %3 = vector.load %arg3[%c0_3, %c0_4] : memref<1x78xf32, #tpu.memory_space<vmem>>, vector<1x78xf32>
    %4 = vector.broadcast %3 : vector<1x78xf32> to vector<16x78xf32>
    %5 = arith.addf %2, %4 : vector<16x78xf32>
    %cst_5 = arith.constant 0.000000e+00 : f32
    %6 = vector.broadcast %cst_5 : f32 to vector<16x78xf32>
    %7 = arith.maximumf %5, %6 : vector<16x78xf32>
    %8 = vector.extract_strided_slice %7 {offsets = [0, 0], sizes = [16, 4], strides = [1, 1]} : vector<16x78xf32> to vector<16x4xf32>
    %9 = vector.extract_strided_slice %7 {offsets = [0, 4], sizes = [16, 4], strides = [1, 1]} : vector<16x78xf32> to vector<16x4xf32>
    %10 = arith.maximumf %8, %9 : vector<16x4xf32>
    %11 = vector.extract_strided_slice %7 {offsets = [0, 8], sizes = [16, 4], strides = [1, 1]} : vector<16x78xf32> to vector<16x4xf32>
    %12 = arith.maximumf %10, %11 : vector<16x4xf32>
    %13 = vector.extract_strided_slice %7 {offsets = [0, 12], sizes = [16, 4], strides = [1, 1]} : vector<16x78xf32> to vector<16x4xf32>
    %14 = arith.maximumf %12, %13 : vector<16x4xf32>
    %15 = vector.extract_strided_slice %7 {offsets = [0, 16], sizes = [16, 4], strides = [1, 1]} : vector<16x78xf32> to vector<16x4xf32>
    %16 = arith.maximumf %14, %15 : vector<16x4xf32>
    %17 = vector.extract_strided_slice %7 {offsets = [0, 20], sizes = [16, 4], strides = [1, 1]} : vector<16x78xf32> to vector<16x4xf32>
    %18 = arith.maximumf %16, %17 : vector<16x4xf32>
    %19 = vector.extract_strided_slice %7 {offsets = [0, 24], sizes = [16, 6], strides = [1, 1]} : vector<16x78xf32> to vector<16x6xf32>
    %20 = vector.extract_strided_slice %7 {offsets = [0, 30], sizes = [16, 6], strides = [1, 1]} : vector<16x78xf32> to vector<16x6xf32>
    %21 = arith.maximumf %19, %20 : vector<16x6xf32>
    %22 = vector.extract_strided_slice %7 {offsets = [0, 36], sizes = [16, 6], strides = [1, 1]} : vector<16x78xf32> to vector<16x6xf32>
    %23 = arith.maximumf %21, %22 : vector<16x6xf32>
    %24 = vector.extract_strided_slice %7 {offsets = [0, 42], sizes = [16, 6], strides = [1, 1]} : vector<16x78xf32> to vector<16x6xf32>
    %25 = arith.maximumf %23, %24 : vector<16x6xf32>
    %26 = vector.extract_strided_slice %7 {offsets = [0, 48], sizes = [16, 6], strides = [1, 1]} : vector<16x78xf32> to vector<16x6xf32>
    %27 = arith.maximumf %25, %26 : vector<16x6xf32>
    %28 = vector.extract_strided_slice %7 {offsets = [0, 54], sizes = [16, 6], strides = [1, 1]} : vector<16x78xf32> to vector<16x6xf32>
    %29 = vector.extract_strided_slice %7 {offsets = [0, 60], sizes = [16, 6], strides = [1, 1]} : vector<16x78xf32> to vector<16x6xf32>
    %30 = arith.maximumf %28, %29 : vector<16x6xf32>
    %31 = vector.extract_strided_slice %7 {offsets = [0, 66], sizes = [16, 6], strides = [1, 1]} : vector<16x78xf32> to vector<16x6xf32>
    %32 = arith.maximumf %30, %31 : vector<16x6xf32>
    %33 = vector.extract_strided_slice %7 {offsets = [0, 72], sizes = [16, 6], strides = [1, 1]} : vector<16x78xf32> to vector<16x6xf32>
    %34 = arith.maximumf %32, %33 : vector<16x6xf32>
    %35 = tpu.concatenate %18, %27, %34 in 1 : vector<16x4xf32>, vector<16x6xf32>, vector<16x6xf32> -> vector<16x16xf32>
    %c0_6 = arith.constant 0 : index
    %c0_7 = arith.constant 0 : index
    %36 = vector.load %arg7[%c0_6, %c0_7] : memref<16x16xf32, #tpu.memory_space<vmem>>, vector<16x16xf32>
    tpu.vector_store %arg7[%c0_6, %c0_7], %35 {strides = array<i32>} : memref<16x16xf32, #tpu.memory_space<vmem>>, vector<16x16xf32>,
    %c0_8 = arith.constant 0 : index
    %c0_9 = arith.constant 0 : index
    %37 = vector.load %arg4[%c0_8, %c0_9] : memref<16x48xbf16, #tpu.memory_space<vmem>>, vector<16x48xbf16>
    %c0_10 = arith.constant 0 : index
    %c0_11 = arith.constant 0 : index
    %38 = vector.load %arg5[%c0_10, %c0_11] : memref<48x78xbf16, #tpu.memory_space<vmem>>, vector<48x78xbf16>
    %cst_12 = arith.constant dense<0.000000e+00> : vector<16x78xf32>
    %39 = tpu.matmul %37, %38, %cst_12 {dimension_numbers = #tpu.dot_dimension_numbers<[1], [0], [0], [1], [0, 0, 1, 1], [], []>} : vector<16x48xbf16>, vector<48x78xbf16>, vector<16x78xf32> -> vector<16x78xf32>
    %c0_13 = arith.constant 0 : index
    %c0_14 = arith.constant 0 : index
    %40 = vector.load %arg6[%c0_13, %c0_14] : memref<1x78xf32, #tpu.memory_space<vmem>>, vector<1x78xf32>
    %41 = vector.broadcast %40 : vector<1x78xf32> to vector<16x78xf32>
    %42 = arith.addf %39, %41 : vector<16x78xf32>
    %cst_15 = arith.constant 0.000000e+00 : f32
    %43 = vector.broadcast %cst_15 : f32 to vector<16x78xf32>
    %44 = arith.maximumf %42, %43 : vector<16x78xf32>
    %45 = vector.extract_strided_slice %44 {offsets = [0, 0], sizes = [16, 4], strides = [1, 1]} : vector<16x78xf32> to vector<16x4xf32>
    %46 = vector.extract_strided_slice %44 {offsets = [0, 4], sizes = [16, 4], strides = [1, 1]} : vector<16x78xf32> to vector<16x4xf32>
    %47 = arith.maximumf %45, %46 : vector<16x4xf32>
    %48 = vector.extract_strided_slice %44 {offsets = [0, 8], sizes = [16, 4], strides = [1, 1]} : vector<16x78xf32> to vector<16x4xf32>
    %49 = arith.maximumf %47, %48 : vector<16x4xf32>
    %50 = vector.extract_strided_slice %44 {offsets = [0, 12], sizes = [16, 4], strides = [1, 1]} : vector<16x78xf32> to vector<16x4xf32>
    %51 = arith.maximumf %49, %50 : vector<16x4xf32>
    %52 = vector.extract_strided_slice %44 {offsets = [0, 16], sizes = [16, 4], strides = [1, 1]} : vector<16x78xf32> to vector<16x4xf32>
    %53 = arith.maximumf %51, %52 : vector<16x4xf32>
    %54 = vector.extract_strided_slice %44 {offsets = [0, 20], sizes = [16, 4], strides = [1, 1]} : vector<16x78xf32> to vector<16x4xf32>
    %55 = arith.maximumf %53, %54 : vector<16x4xf32>
    %56 = vector.extract_strided_slice %44 {offsets = [0, 24], sizes = [16, 6], strides = [1, 1]} : vector<16x78xf32> to vector<16x6xf32>
    %57 = vector.extract_strided_slice %44 {offsets = [0, 30], sizes = [16, 6], strides = [1, 1]} : vector<16x78xf32> to vector<16x6xf32>
    %58 = arith.maximumf %56, %57 : vector<16x6xf32>
    %59 = vector.extract_strided_slice %44 {offsets = [0, 36], sizes = [16, 6], strides = [1, 1]} : vector<16x78xf32> to vector<16x6xf32>
    %60 = arith.maximumf %58, %59 : vector<16x6xf32>
    %61 = vector.extract_strided_slice %44 {offsets = [0, 42], sizes = [16, 6], strides = [1, 1]} : vector<16x78xf32> to vector<16x6xf32>
    %62 = arith.maximumf %60, %61 : vector<16x6xf32>
    %63 = vector.extract_strided_slice %44 {offsets = [0, 48], sizes = [16, 6], strides = [1, 1]} : vector<16x78xf32> to vector<16x6xf32>
    %64 = arith.maximumf %62, %63 : vector<16x6xf32>
    %65 = vector.extract_strided_slice %44 {offsets = [0, 54], sizes = [16, 6], strides = [1, 1]} : vector<16x78xf32> to vector<16x6xf32>
    %66 = vector.extract_strided_slice %44 {offsets = [0, 60], sizes = [16, 6], strides = [1, 1]} : vector<16x78xf32> to vector<16x6xf32>
    %67 = arith.maximumf %65, %66 : vector<16x6xf32>
    %68 = vector.extract_strided_slice %44 {offsets = [0, 66], sizes = [16, 6], strides = [1, 1]} : vector<16x78xf32> to vector<16x6xf32>
    %69 = arith.maximumf %67, %68 : vector<16x6xf32>
    %70 = vector.extract_strided_slice %44 {offsets = [0, 72], sizes = [16, 6], strides = [1, 1]} : vector<16x78xf32> to vector<16x6xf32>
    %71 = arith.maximumf %69, %70 : vector<16x6xf32>
    %72 = tpu.concatenate %55, %64, %71 in 1 : vector<16x4xf32>, vector<16x6xf32>, vector<16x6xf32> -> vector<16x16xf32>
    %c0_16 = arith.constant 0 : index
    %c0_17 = arith.constant 0 : index
    %73 = vector.load %arg8[%c0_16, %c0_17] : memref<16x16xf32, #tpu.memory_space<vmem>>, vector<16x16xf32>
    tpu.vector_store %arg8[%c0_16, %c0_17], %72 {strides = array<i32>} : memref<16x16xf32, #tpu.memory_space<vmem>>, vector<16x16xf32>,
    return
  }
  func.func @transform_0(%arg0: i32) -> (i32, i32) {
    %c0_i32 = arith.constant 0 : i32
    %c0_i32_0 = arith.constant 0 : i32
    %c0_i32_1 = arith.constant 0 : i32
    return %c0_i32, %c0_i32_0 : i32, i32
  }
  func.func @transform_1(%arg0: i32) -> (i32, i32) {
    %c0_i32 = arith.constant 0 : i32
    %c0_i32_0 = arith.constant 0 : i32
    %c0_i32_1 = arith.constant 0 : i32
    return %c0_i32, %c0_i32_0 : i32, i32
  }
  func.func @transform_2(%arg0: i32) -> (i32, i32) {
    %c0_i32 = arith.constant 0 : i32
    %c0_i32_0 = arith.constant 0 : i32
    %c0_i32_1 = arith.constant 0 : i32
    return %c0_i32, %c0_i32_0 : i32, i32
  }
  func.func @transform_3(%arg0: i32) -> (i32, i32) {
    %c0_i32 = arith.constant 0 : i32
    %c0_i32_0 = arith.constant 0 : i32
    %c0_i32_1 = arith.constant 0 : i32
    return %c0_i32, %c0_i32_0 : i32, i32
  }
  func.func @transform_4(%arg0: i32) -> (i32, i32) {
    %c0_i32 = arith.constant 0 : i32
    %c0_i32_0 = arith.constant 0 : i32
    %c0_i32_1 = arith.constant 0 : i32
    return %c0_i32, %c0_i32_0 : i32, i32
  }
  func.func @transform_5(%arg0: i32) -> (i32, i32) {
    %c0_i32 = arith.constant 0 : i32
    %c0_i32_0 = arith.constant 0 : i32
    %c0_i32_1 = arith.constant 0 : i32
    return %c0_i32, %c0_i32_0 : i32, i32
  }
  func.func @transform_6(%arg0: i32) -> (i32, i32) {
    %c0_i32 = arith.constant 0 : i32
    %c0_i32_0 = arith.constant 0 : i32
    %c0_i32_1 = arith.constant 0 : i32
    return %c0_i32, %c0_i32_0 : i32, i32
  }
  func.func @transform_7(%arg0: i32) -> (i32, i32) {
    %c0_i32 = arith.constant 0 : i32
    %c0_i32_0 = arith.constant 0 : i32
    %c0_i32_1 = arith.constant 0 : i32
    return %c0_i32, %c0_i32_0 : i32, i32
  }
}

</mosaic_0001>

<llo_original>
// kernel: tpu_custom_call.1
$region0: #{tpu_custom_call.1}
  #allocation0 [shape = 'u32[]', space=smem, size = 0x4, offset = 0x4, fixed_abs, tag = 'smem constant byte address 0x4 - core index']
  #allocation1 [shape = 'u32[144,128]{1,0:T(1,128)}', space=vmem, size = 0x12000, scoped, tag = 'internal scratch']
  %s0 = inlined_call_operand.hbm [shape: bf16[16,48], index: 0, kind: input, shape index: {}]
  %s1 = inlined_call_operand.hbm [shape: bf16[48,78], index: 1, kind: input, shape index: {}]
  %s2 = inlined_call_operand.vmem [shape: f32[1,78], index: 2, kind: input, shape index: {}]
  %s3 = inlined_call_operand.vmem [shape: bf16[16,48], index: 3, kind: input, shape index: {}]
  %s4 = inlined_call_operand.hbm [shape: bf16[48,78], index: 4, kind: input, shape index: {}]
  %s5 = inlined_call_operand.vmem [shape: f32[1,78], index: 5, kind: input, shape index: {}]
  %s6 = inlined_call_operand.hbm [shape: f32[16,16], index: 6, kind: output, shape index: {0}]
  %s7 = inlined_call_operand.hbm [shape: f32[16,16], index: 7, kind: output, shape index: {1}]
  %8 = xla_tuple %s6, %s7
  %s9 = sld [smem:[#allocation0]]
  $region54: #{tpu_custom_call.1} parent=0
    _
  %s11 = ssub.s32 1, %s9
  %s12 = scalar_select 0, %s11, %s9
  $region1: #{tpu_custom_call.1} parent=0
    #allocation2 [shape = 'u8[4096]{0}', space=vmem, size = 0x1000, scoped, tag = 'input window, operand 0, single buffered']
    #allocation3 [shape = 's32[1]{0}', space=sflag, size = 0x4, scoped, tag = 'scoped memory for tpu_custom_call.1']
    #allocation4 [shape = 's32[1]{0}', space=sflag, size = 0x4, scoped, tag = 'scoped memory for tpu_custom_call.1']
    #allocation5 [shape = 'u8[12288]{0}', space=vmem, size = 0x3000, scoped, tag = 'input window, operand 1, single buffered']
    #allocation6 [shape = 's32[1]{0}', space=sflag, size = 0x4, scoped, tag = 'scoped memory for tpu_custom_call.1']
    #allocation7 [shape = 'u8[12288]{0}', space=vmem, size = 0x3000, scoped, tag = 'input window, operand 4, single buffered']
    #allocation8 [shape = 'u8[8192]{0}', space=vmem, size = 0x2000, scoped, tag = 'output window, operand 0, single buffered']
    #allocation9 [shape = 'u8[8192]{0}', space=vmem, size = 0x2000, scoped, tag = 'output window, operand 1, single buffered']
    #allocation10 [shape = 's32[1]{0}', space=sflag, size = 0x4, scoped, tag = 'scoped memory for tpu_custom_call.1']
    %13 = vsyncpa [#allocation3], 0
    %14 = vsyncpa [#allocation6], 0
    %15 = vsyncpa [#allocation4], 0
    %16 = vsyncpa [#allocation10], 0
    // Predicated region
    $region2: #{tpu_custom_call.1} parent=1 // pred_check
      _
    $region3: #{tpu_custom_call.1} parent=1 // pred_check_branch
      %18 = sbr.rel (0) target = $region5
    $region4: #{tpu_custom_call.1} parent=1 // pred_region
      %s20 = ssub.s32 128, 128
      %21 = vsyncadd [#allocation3], %s20
      %s22 = sshll.u32 [#allocation2], 4
      %s23 = int_to_ptr.vmem [resolvable:$true] %s22
      %28 = dma.hbm_to_vmem [thread:$0]  %s0, 128, %s23, [#allocation3], 64, 64, 4
    $region5: #{tpu_custom_call.1} parent=1 // pred_fallthru
      _
    // Predicated region
    $region6: #{tpu_custom_call.1} parent=1 // pred_check
      _
    $region7: #{tpu_custom_call.1} parent=1 // pred_check_branch
      %30 = sbr.rel (0) target = $region9
    $region8: #{tpu_custom_call.1} parent=1 // pred_region
      %s32 = ssub.s32 384, 384
      %33 = vsyncadd [#allocation6], %s32
      %s34 = sshll.u32 [#allocation5], 4
      %s35 = int_to_ptr.vmem [resolvable:$true] %s34
      %40 = dma.hbm_to_vmem [thread:$0]  %s1, 384, %s35, [#allocation6], 64, 64, 4
    $region9: #{tpu_custom_call.1} parent=1 // pred_fallthru
      _
    // Predicated region
    $region10: #{tpu_custom_call.1} parent=1 // pred_check
      _
    $region11: #{tpu_custom_call.1} parent=1 // pred_check_branch
      %42 = sbr.rel (0) target = $region13
    $region12: #{tpu_custom_call.1} parent=1 // pred_region
      _
    $region13: #{tpu_custom_call.1} parent=1 // pred_fallthru
      _
    // Predicated region
    $region14: #{tpu_custom_call.1} parent=1 // pred_check
      _
    $region15: #{tpu_custom_call.1} parent=1 // pred_check_branch
      %44 = sbr.rel (0) target = $region17
    $region16: #{tpu_custom_call.1} parent=1 // pred_region
      _
    $region17: #{tpu_custom_call.1} parent=1 // pred_fallthru
      _
    // Predicated region
    $region18: #{tpu_custom_call.1} parent=1 // pred_check
      _
    $region19: #{tpu_custom_call.1} parent=1 // pred_check_branch
      %46 = sbr.rel (0) target = $region21
    $region20: #{tpu_custom_call.1} parent=1 // pred_region
      %s48 = ssub.s32 384, 384
      %49 = vsyncadd [#allocation6], %s48
      %s50 = sshll.u32 [#allocation7], 4
      %s51 = int_to_ptr.vmem [resolvable:$true] %s50
      %56 = dma.hbm_to_vmem [thread:$0]  %s4, 384, %s51, [#allocation6], 64, 64, 4
    $region21: #{tpu_custom_call.1} parent=1 // pred_fallthru
      _
    // Predicated region
    $region22: #{tpu_custom_call.1} parent=1 // pred_check
      _
    $region23: #{tpu_custom_call.1} parent=1 // pred_check_branch
      %58 = sbr.rel (0) target = $region25
    $region24: #{tpu_custom_call.1} parent=1 // pred_region
      _
    $region25: #{tpu_custom_call.1} parent=1 // pred_fallthru
      _
    // Predicated region
    $region26: #{tpu_custom_call.1} parent=1 // pred_check
      _
    $region27: #{tpu_custom_call.1} parent=1 // pred_check_branch
      %60 = sbr.rel (0) target = $region29
    $region28: #{tpu_custom_call.1} parent=1 // pred_region
      %61 = dma.done [#allocation3], 128
    $region29: #{tpu_custom_call.1} parent=1 // pred_fallthru
      _
    // Predicated region
    $region30: #{tpu_custom_call.1} parent=1 // pred_check
      _
    $region31: #{tpu_custom_call.1} parent=1 // pred_check_branch
      %63 = sbr.rel (0) target = $region33
    $region32: #{tpu_custom_call.1} parent=1 // pred_region
      %64 = dma.done [#allocation6], 384
    $region33: #{tpu_custom_call.1} parent=1 // pred_fallthru
      _
    // Predicated region
    $region34: #{tpu_custom_call.1} parent=1 // pred_check
      _
    $region35: #{tpu_custom_call.1} parent=1 // pred_check_branch
      %66 = sbr.rel (0) target = $region37
    $region36: #{tpu_custom_call.1} parent=1 // pred_region
      %67 = dma.done [#allocation6], 384
    $region37: #{tpu_custom_call.1} parent=1 // pred_fallthru
      _
    %v69 = vld [vmem:[#allocation2] sm:$0xf]
    %v70 = vld [vmem:[#allocation2 + $0x4] sm:$0xf]
    %v71 = vld [vmem:[#allocation5] sm:$0xf]
    %v72 = vld [vmem:[#allocation5 + $0x4] sm:$0xf]
    %v73 = vld [vmem:[#allocation5 + $0x8] sm:$0xf]
    %v74 = vld [vmem:[#allocation5 + $0xc] sm:$0xf]
    %v75 = vld [vmem:[#allocation5 + $0x10] sm:$0xf]
    %v76 = vld [vmem:[#allocation5 + $0x14] sm:$0xf]
    %v77 = vld [vmem:[%s2] sm:$0x1]
    %v79 = vlaneseq
    %v80 = vshrl.u32 %v79, 7
    %v81 = vsub.s32 0, %v80
    %v82 = vrot.slane %v77, %v81
    %v86 = vunpack.c.l.b16 %v69
    %v87 = vunpack.c.l.b16 %v70
    %v88 = vpack.c.b16 %v87, %v86
    %v95 = vunpack.c.l.b16 %v71
    %v96 = vunpack.c.l.b16 %v72
    %v97 = vunpack.c.l.b16 %v73
    %v98 = vunpack.c.l.b16 %v74
    %v99 = vunpack.c.l.b16 %v75
    %v100 = vunpack.c.l.b16 %v76
    %v101 = vpack.c.b16 %v96, %v95
    %v102 = vpack.c.b16 %v98, %v97
    %v103 = vpack.c.b16 %v100, %v99
    %vm107 = vcmask 392192
    %v109 = vsel %vm107, %v88, 0
    %111 = vmatprep.subr.bf16.mxu0 0
    %112 = vmatpush1.bf16.msra.mxu0 %v101
    %113 = vmatprep.subr.bf16.mxu0 0
    %114 = vmatpush1.bf16.msra.mxu0 %v102
    %115 = vmatprep.subr.bf16.mxu0 0
    %116 = vmatpush1.bf16.msra.mxu0 %v103
    %117 = vmatprep.subr.bf16.mxu0 0
    %118 = vmatpush1.bf16.msra.mxu0 0
    %119 = vmatprep.subr.bf16.mxu0 0
    %120 = vmatpush1.bf16.msra.mxu0 0
    %121 = vmatprep.subr.bf16.mxu0 0
    %122 = vmatpush1.bf16.msra.mxu0 0
    %123 = vmatprep.subr.bf16.mxu0 0
    %124 = vmatpush1.bf16.msra.mxu0 0
    %125 = vmatprep.subr.bf16.mxu0 0
    %126 = vmatpush1.bf16.msra.mxu0 0
    %127 = vmatprep.subr.bf16.mxu0 0
    %128 = vmatpush1.bf16.msra.mxu0 0
    %129 = vmatprep.subr.bf16.mxu0 0
    %130 = vmatpush1.bf16.msra.mxu0 0
    %131 = vmatprep.subr.bf16.mxu0 0
    %132 = vmatpush1.bf16.msra.mxu0 0
    %133 = vmatprep.subr.bf16.mxu0 0
    %134 = vmatpush1.bf16.msra.mxu0 0
    %135 = vmatprep.subr.bf16.mxu0 0
    %136 = vmatpush1.bf16.msra.mxu0 0
    %137 = vmatprep.subr.bf16.mxu0 0
    %138 = vmatpush1.bf16.msra.mxu0 0
    %139 = vmatprep.subr.bf16.mxu0 0
    %140 = vmatpush1.bf16.msra.mxu0 0
    %141 = vmatprep.subr.bf16.mxu0 0
    %142 = vmatpush1.bf16.msra.mxu0 0
    %143 = vmatprep.mubr.bf16.mxu0 0
    %144 = vmatmul.mubr.bf16.gmra.mrb[0].mxu0 %v109
    %v145 = vpop.f32.mrb[0].mxu0
    %v146 = vadd.f32 %v82, %v145
    %v147 = vpop.f32.mrb[0].mxu0
    %v148 = vpop.f32.mrb[0].mxu0
    %v149 = vadd.f32 %v82, %v148
    %v150 = vpop.f32.mrb[0].mxu0
    %151 = vdwg.mxu0
    %v152 = vmax.f32 %v146, 0.0
    %v153 = vmax.f32 %v149, 0.0
    %156 = vrot.lane.b32.xlu0 %v152, 124
    %v157 = vpop.permute.xlu0 %156
    %158 = vrot.lane.b32.xlu0 %v153, 124
    %v159 = vpop.permute.xlu0 %158
    %v162 = vmax.f32 %v152, %v157
    %v163 = vmax.f32 %v153, %v159
    %164 = vrot.lane.b32.xlu0 %v152, 120
    %v165 = vpop.permute.xlu0 %164
    %166 = vrot.lane.b32.xlu0 %v153, 120
    %v167 = vpop.permute.xlu0 %166
    %v170 = vmax.f32 %v162, %v165
    %v171 = vmax.f32 %v163, %v167
    %172 = vrot.lane.b32.xlu0 %v152, 116
    %v173 = vpop.permute.xlu0 %172
    %174 = vrot.lane.b32.xlu0 %v153, 116
    %v175 = vpop.permute.xlu0 %174
    %v178 = vmax.f32 %v170, %v173
    %v179 = vmax.f32 %v171, %v175
    %180 = vrot.lane.b32.xlu0 %v152, 112
    %v181 = vpop.permute.xlu0 %180
    %182 = vrot.lane.b32.xlu0 %v153, 112
    %v183 = vpop.permute.xlu0 %182
    %v186 = vmax.f32 %v178, %v181
    %v187 = vmax.f32 %v179, %v183
    %188 = vrot.lane.b32.xlu0 %v152, 108
    %v189 = vpop.permute.xlu0 %188
    %190 = vrot.lane.b32.xlu0 %v153, 108
    %v191 = vpop.permute.xlu0 %190
    %v194 = vmax.f32 %v186, %v189
    %v195 = vmax.f32 %v187, %v191
    %196 = vrot.lane.b32.xlu0 %v152, 122
    %v197 = vpop.permute.xlu0 %196
    %198 = vrot.lane.b32.xlu0 %v153, 122
    %v199 = vpop.permute.xlu0 %198
    %v202 = vmax.f32 %v152, %v197
    %v203 = vmax.f32 %v153, %v199
    %v204 = vmax.f32 %v202, %v173
    %v205 = vmax.f32 %v203, %v175
    %206 = vrot.lane.b32.xlu0 %v152, 110
    %v207 = vpop.permute.xlu0 %206
    %208 = vrot.lane.b32.xlu0 %v153, 110
    %v209 = vpop.permute.xlu0 %208
    %v212 = vmax.f32 %v204, %v207
    %v213 = vmax.f32 %v205, %v209
    %214 = vrot.lane.b32.xlu0 %v152, 104
    %v215 = vpop.permute.xlu0 %214
    %216 = vrot.lane.b32.xlu0 %v153, 104
    %v217 = vpop.permute.xlu0 %216
    %v220 = vmax.f32 %v212, %v215
    %v221 = vmax.f32 %v213, %v217
    %224 = vrot.lane.b32.xlu0 %v220, 108
    %v225 = vpop.permute.xlu0 %224
    %226 = vrot.lane.b32.xlu0 %v221, 108
    %v227 = vpop.permute.xlu0 %226
    %232 = vrot.lane.b32.xlu0 %v212, 84
    %v233 = vpop.permute.xlu0 %232
    %234 = vrot.lane.b32.xlu0 %v213, 84
    %v235 = vpop.permute.xlu0 %234
    %vm238 = vcmask 31744
    %v239 = vsel %vm238, %v194, %v225
    %v240 = vsel %vm238, %v195, %v227
    %vm241 = vcmask 80896
    %v242 = vsel %vm241, %v239, %v233
    %v243 = vsel %vm241, %v240, %v235
    %vm244 = vcmask 130048
    %245 = vst.msk [vmem:[#allocation8] sm:$0xff] %vm244, %v242
    %246 = vst.msk [vmem:[#allocation8 + $0x8] sm:$0xff] %vm244, %v243
    %v247 = vld [vmem:[%s3] sm:$0xf]
    %v248 = vld [vmem:[%s3 + $0x4] sm:$0xf]
    %v249 = vld [vmem:[#allocation7] sm:$0xf]
    %v250 = vld [vmem:[#allocation7 + $0x4] sm:$0xf]
    %v251 = vld [vmem:[#allocation7 + $0x8] sm:$0xf]
    %v252 = vld [vmem:[#allocation7 + $0xc] sm:$0xf]
    %v253 = vld [vmem:[#allocation7 + $0x10] sm:$0xf]
    %v254 = vld [vmem:[#allocation7 + $0x14] sm:$0xf]
    %v255 = vld [vmem:[%s5] sm:$0x1]
    %v257 = vlaneseq
    %v258 = vshrl.u32 %v257, 7
    %v259 = vsub.s32 0, %v258
    %v260 = vrot.slane %v255, %v259
    %v264 = vunpack.c.l.b16 %v247
    %v265 = vunpack.c.l.b16 %v248
    %v266 = vpack.c.b16 %v265, %v264
    %v273 = vunpack.c.l.b16 %v249
    %v274 = vunpack.c.l.b16 %v250
    %v275 = vunpack.c.l.b16 %v251
    %v276 = vunpack.c.l.b16 %v252
    %v277 = vunpack.c.l.b16 %v253
    %v278 = vunpack.c.l.b16 %v254
    %v279 = vpack.c.b16 %v274, %v273
    %v280 = vpack.c.b16 %v276, %v275
    %v281 = vpack.c.b16 %v278, %v277
    %v286 = vsel %vm107, %v266, 0
    %288 = vmatprep.subr.bf16.mxu0 0
    %289 = vmatpush1.bf16.msra.mxu0 %v279
    %290 = vmatprep.subr.bf16.mxu0 0
    %291 = vmatpush1.bf16.msra.mxu0 %v280
    %292 = vmatprep.subr.bf16.mxu0 0
    %293 = vmatpush1.bf16.msra.mxu0 %v281
    %294 = vmatprep.subr.bf16.mxu0 0
    %295 = vmatpush1.bf16.msra.mxu0 0
    %296 = vmatprep.subr.bf16.mxu0 0
    %297 = vmatpush1.bf16.msra.mxu0 0
    %298 = vmatprep.subr.bf16.mxu0 0
    %299 = vmatpush1.bf16.msra.mxu0 0
    %300 = vmatprep.subr.bf16.mxu0 0
    %301 = vmatpush1.bf16.msra.mxu0 0
    %302 = vmatprep.subr.bf16.mxu0 0
    %303 = vmatpush1.bf16.msra.mxu0 0
    %304 = vmatprep.subr.bf16.mxu0 0
    %305 = vmatpush1.bf16.msra.mxu0 0
    %306 = vmatprep.subr.bf16.mxu0 0
    %307 = vmatpush1.bf16.msra.mxu0 0
    %308 = vmatprep.subr.bf16.mxu0 0
    %309 = vmatpush1.bf16.msra.mxu0 0
    %310 = vmatprep.subr.bf16.mxu0 0
    %311 = vmatpush1.bf16.msra.mxu0 0
    %312 = vmatprep.subr.bf16.mxu0 0
    %313 = vmatpush1.bf16.msra.mxu0 0
    %314 = vmatprep.subr.bf16.mxu0 0
    %315 = vmatpush1.bf16.msra.mxu0 0
    %316 = vmatprep.subr.bf16.mxu0 0
    %317 = vmatpush1.bf16.msra.mxu0 0
    %318 = vmatprep.subr.bf16.mxu0 0
    %319 = vmatpush1.bf16.msra.mxu0 0
    %320 = vmatprep.mubr.bf16.mxu0 0
    %321 = vmatmul.mubr.bf16.gmra.mrb[0].mxu0 %v286
    %v322 = vpop.f32.mrb[0].mxu0
    %v323 = vadd.f32 %v260, %v322
    %v324 = vpop.f32.mrb[0].mxu0
    %v325 = vpop.f32.mrb[0].mxu0
    %v326 = vadd.f32 %v260, %v325
    %v327 = vpop.f32.mrb[0].mxu0
    %328 = vdwg.mxu0
    %v329 = vmax.f32 %v323, 0.0
    %v330 = vmax.f32 %v326, 0.0
    %333 = vrot.lane.b32.xlu0 %v329, 124
    %v334 = vpop.permute.xlu0 %333
    %335 = vrot.lane.b32.xlu0 %v330, 124
    %v336 = vpop.permute.xlu0 %335
    %v339 = vmax.f32 %v329, %v334
    %v340 = vmax.f32 %v330, %v336
    %341 = vrot.lane.b32.xlu0 %v329, 120
    %v342 = vpop.permute.xlu0 %341
    %343 = vrot.lane.b32.xlu0 %v330, 120
    %v344 = vpop.permute.xlu0 %343
    %v347 = vmax.f32 %v339, %v342
    %v348 = vmax.f32 %v340, %v344
    %349 = vrot.lane.b32.xlu0 %v329, 116
    %v350 = vpop.permute.xlu0 %349
    %351 = vrot.lane.b32.xlu0 %v330, 116
    %v352 = vpop.permute.xlu0 %351
    %v355 = vmax.f32 %v347, %v350
    %v356 = vmax.f32 %v348, %v352
    %357 = vrot.lane.b32.xlu0 %v329, 112
    %v358 = vpop.permute.xlu0 %357
    %359 = vrot.lane.b32.xlu0 %v330, 112
    %v360 = vpop.permute.xlu0 %359
    %v363 = vmax.f32 %v355, %v358
    %v364 = vmax.f32 %v356, %v360
    %365 = vrot.lane.b32.xlu0 %v329, 108
    %v366 = vpop.permute.xlu0 %365
    %367 = vrot.lane.b32.xlu0 %v330, 108
    %v368 = vpop.permute.xlu0 %367
    %v371 = vmax.f32 %v363, %v366
    %v372 = vmax.f32 %v364, %v368
    %373 = vrot.lane.b32.xlu0 %v329, 122
    %v374 = vpop.permute.xlu0 %373
    %375 = vrot.lane.b32.xlu0 %v330, 122
    %v376 = vpop.permute.xlu0 %375
    %v379 = vmax.f32 %v329, %v374
    %v380 = vmax.f32 %v330, %v376
    %v381 = vmax.f32 %v379, %v350
    %v382 = vmax.f32 %v380, %v352
    %383 = vrot.lane.b32.xlu0 %v329, 110
    %v384 = vpop.permute.xlu0 %383
    %385 = vrot.lane.b32.xlu0 %v330, 110
    %v386 = vpop.permute.xlu0 %385
    %v389 = vmax.f32 %v381, %v384
    %v390 = vmax.f32 %v382, %v386
    %391 = vrot.lane.b32.xlu0 %v329, 104
    %v392 = vpop.permute.xlu0 %391
    %393 = vrot.lane.b32.xlu0 %v330, 104
    %v394 = vpop.permute.xlu0 %393
    %v397 = vmax.f32 %v389, %v392
    %v398 = vmax.f32 %v390, %v394
    %401 = vrot.lane.b32.xlu0 %v397, 108
    %v402 = vpop.permute.xlu0 %401
    %403 = vrot.lane.b32.xlu0 %v398, 108
    %v404 = vpop.permute.xlu0 %403
    %409 = vrot.lane.b32.xlu0 %v389, 84
    %v410 = vpop.permute.xlu0 %409
    %411 = vrot.lane.b32.xlu0 %v390, 84
    %v412 = vpop.permute.xlu0 %411
    %v415 = vsel %vm238, %v371, %v402
    %v416 = vsel %vm238, %v372, %v404
    %v417 = vsel %vm241, %v415, %v410
    %v418 = vsel %vm241, %v416, %v412
    %419 = vst.msk [vmem:[#allocation9] sm:$0xff] %vm244, %v417
    %420 = vst.msk [vmem:[#allocation9 + $0x8] sm:$0xff] %vm244, %v418
    // Predicated region
    $region38: #{tpu_custom_call.1} parent=1 // pred_check
      _
    $region39: #{tpu_custom_call.1} parent=1 // pred_check_branch
      %422 = sbr.rel (0) target = $region41
    $region40: #{tpu_custom_call.1} parent=1 // pred_region
      %s424 = ssub.s32 256, 256
      %425 = vsyncadd [#allocation4], %s424
      %s426 = sshll.u32 [#allocation8], 4
      %s427 = int_to_ptr.vmem [resolvable:$true] %s426
      %432 = dma.vmem_to_hbm [thread:$0]  %s427, 256, %s6, [#allocation4], 128, 128, 8
    $region41: #{tpu_custom_call.1} parent=1 // pred_fallthru
      _
    // Predicated region
    $region42: #{tpu_custom_call.1} parent=1 // pred_check
      _
    $region43: #{tpu_custom_call.1} parent=1 // pred_check_branch
      %434 = sbr.rel (0) target = $region45
    $region44: #{tpu_custom_call.1} parent=1 // pred_region
      %s436 = ssub.s32 256, 256
      %437 = vsyncadd [#allocation10], %s436
      %s438 = sshll.u32 [#allocation9], 4
      %s439 = int_to_ptr.vmem [resolvable:$true] %s438
      %444 = dma.vmem_to_hbm [thread:$0]  %s439, 256, %s7, [#allocation10], 128, 128, 8
    $region45: #{tpu_custom_call.1} parent=1 // pred_fallthru
      _
    // Predicated region
    $region46: #{tpu_custom_call.1} parent=1 // pred_check
      _
    $region47: #{tpu_custom_call.1} parent=1 // pred_check_branch
      %446 = sbr.rel (0) target = $region49
    $region48: #{tpu_custom_call.1} parent=1 // pred_region
      %447 = dma.done [#allocation4], 256
    $region49: #{tpu_custom_call.1} parent=1 // pred_fallthru
      _
    // Predicated region
    $region50: #{tpu_custom_call.1} parent=1 // pred_check
      _
    $region51: #{tpu_custom_call.1} parent=1 // pred_check_branch
      %449 = sbr.rel (0) target = $region53
    $region52: #{tpu_custom_call.1} parent=1 // pred_region
      %450 = dma.done [#allocation10], 256
    $region53: #{tpu_custom_call.1} parent=1 // pred_fallthru
      _
    %451 = vsyncpa [#allocation3], 1
    %452 = vsyncpa [#allocation6], 1
    %453 = vsyncpa [#allocation4], 1
    %454 = vsyncpa [#allocation10], 1

</llo_original>
